<compile_context>
chip_gen: v7x
topology: tpu7x:2x2x1
jax: 0.10.0
libtpu: 0.0.40
codegen_flags: <defaults>
</compile_context>

<pallas_src>
import functools

import jax
import jax.numpy as jnp
from jax.experimental import pallas as pl
from jax.experimental.pallas import tpu as pltpu


def _se_res_dp_head_kernel(x_ref, wmax_ref, wavg_ref, b_ref, o_ref, *,
                           spatial_axis):
    # x_ref:    (b_tile, C, HW)  [NCHW path, spatial_axis=2]  or
    #           (b_tile, HW, C)  [NHWC path, spatial_axis=1]
    # wmax_ref: (C, NC_pad)      max-pool half of the linear weight
    # wavg_ref: (C, NC_pad)      avg-pool half, pre-scaled by 1/HW
    # b_ref:    (1, NC_pad)      bias, zero-padded to NC_pad
    # o_ref:    (b_tile, NC_pad) logits (padded class dim)
    x = x_ref[...]

    # Global max / sum pooling over the spatial axis.  Sum accumulates in f32
    # regardless of input dtype (so bf16 feature maps stay exact enough).
    max_feat = jnp.max(x, axis=spatial_axis)                      # (b_tile, C)
    sum_feat = jnp.sum(x, axis=spatial_axis, dtype=jnp.float32)   # (b_tile, C)

    cdt = wmax_ref.dtype  # compute dtype for the MXU (bf16 or f32)
    out = (
        jnp.dot(max_feat.astype(cdt), wmax_ref[...],
                preferred_element_type=jnp.float32)
        + jnp.dot(sum_feat.astype(cdt), wavg_ref[...],
                  preferred_element_type=jnp.float32)
        + b_ref[...]
    )
    o_ref[...] = out.astype(o_ref.dtype)


def _default_vmem_sizing():
    """Pick (input-block bytes, vmem_limit_bytes) for the local TPU generation."""
    try:
        cap = int(getattr(pltpu.get_tpu_info(), "vmem_capacity_bytes", 0))
    except Exception:
        cap = 0
    if cap >= 100 * 1024 * 1024:          # v5e / v6e: 128 MiB VMEM
        return 28 * 1024 * 1024, 96 * 1024 * 1024
    # v7x (64 MiB physical) or unknown: conservative, double-buffer-safe.
    return 16 * 1024 * 1024, 48 * 1024 * 1024


def se_res_dp_head(feat, weight, bias, *, channels_last=False,
                   compute_dtype=None, vmem_tile_bytes=None,
                   vmem_limit_bytes=None):
    """SeResDp head (pool + concat + dropout(eval) + linear) as a Pallas kernel.

    feat:   (B, C, H, W) NCHW (PyTorch layout, default) or (B, H, W, C) NHWC
            (`channels_last=True`, preferred: zero layout work).
    weight: (num_classes, 2*C) nn.Linear weight (PyTorch layout,
            columns [0:C] -> max-pool half, [C:2C] -> avg-pool half).
    bias:   (num_classes,)
    """
    if channels_last:
        B, H, W, C = feat.shape
    else:
        B, C, H, W = feat.shape
    HW = H * W
    num_classes = weight.shape[0]
    assert weight.shape[1] == 2 * C

    # Free reshape only -- no HBM transpose of the (dominant) feature map.
    if channels_last:
        x = feat.reshape(B, HW, C)        # channels on lanes, reduce axis 1 (VPU)
        spatial_axis = 1
        x_block = lambda bt: (bt, HW, C)
    else:
        x = feat.reshape(B, C, HW)        # spatial on lanes, reduce axis 2 (XLU)
        spatial_axis = 2
        x_block = lambda bt: (bt, C, HW)

    # Compute dtype: bf16 inputs -> bf16 MXU operands (native fast path,
    # halves the resident weights); f32 inputs stay f32 (accumulation is f32
    # in both cases).  Callers may force bf16 via compute_dtype.
    if compute_dtype is None:
        compute_dtype = jnp.bfloat16 if feat.dtype == jnp.bfloat16 else jnp.float32

    # Fuse Linear(2C -> NC):
    #   concat([max, avg]) @ W.T + b == max @ Wmax + sum @ (Wavg / HW) + b
    nc_pad = ((num_classes + 127) // 128) * 128   # lane-dense output stores
    pad = nc_pad - num_classes
    w_max = jnp.transpose(weight[:, :C]).astype(jnp.float32)
    w_avg = jnp.transpose(weight[:, C:]).astype(jnp.float32) / float(HW)
    w_max = jnp.pad(w_max, ((0, 0), (0, pad))).astype(compute_dtype)   # (C, NC_pad)
    w_avg = jnp.pad(w_avg, ((0, 0), (0, pad))).astype(compute_dtype)   # (C, NC_pad)
    bias_p = jnp.pad(bias.astype(jnp.float32), (0, pad)).reshape(1, nc_pad)

    # Generation-aware VMEM sizing (input block is double-buffered by Pallas).
    dflt_tile, dflt_limit = _default_vmem_sizing()
    if vmem_tile_bytes is None:
        vmem_tile_bytes = dflt_tile
    if vmem_limit_bytes is None:
        vmem_limit_bytes = dflt_limit

    # Batch tile: fit the VMEM budget; for B > 8 keep >= 2 grid steps so the
    # "parallel" batch axis can shard across v7x's two TensorCores, keep the
    # tile sublane-aligned (multiple of 8), and let the last block be ragged
    # (Pallas masks out-of-range output rows; per-row pooling means garbage
    # rows in the padded input block never contaminate valid rows).
    bytes_per_sample = HW * C * feat.dtype.itemsize
    b_budget = max(1, vmem_tile_bytes // max(1, bytes_per_sample))
    b_tile = min(B, b_budget)
    if B > 8:
        b_tile = min(b_tile, -(-B // 2))          # >= 2 grid steps
        b_tile = max(8, (b_tile // 8) * 8)        # sublane-aligned blocks
        b_tile = min(b_tile, B)
    else:
        b_tile = B                                # tiny batch: one full block
    grid = (pl.cdiv(B, b_tile),)

    out_padded = pl.pallas_call(
        functools.partial(_se_res_dp_head_kernel, spatial_axis=spatial_axis),
        out_shape=jax.ShapeDtypeStruct((B, nc_pad), jnp.float32),
        grid_spec=pltpu.PrefetchScalarGridSpec(
            num_scalar_prefetch=0,
            grid=grid,
            in_specs=[
                pl.BlockSpec(x_block(b_tile), lambda i: (i, 0, 0)),
                pl.BlockSpec((C, nc_pad), lambda i: (0, 0)),   # resident
                pl.BlockSpec((C, nc_pad), lambda i: (0, 0)),   # resident
                pl.BlockSpec((1, nc_pad), lambda i: (0, 0)),   # resident
            ],
            out_specs=pl.BlockSpec((b_tile, nc_pad), lambda i: (i, 0)),
        ),
        compiler_params=pltpu.CompilerParams(
            dimension_semantics=("parallel",),
            vmem_limit_bytes=vmem_limit_bytes,
        ),
    )(x, w_max, w_avg, bias_p)

    return out_padded[:, :num_classes]


def _reference(feat, weight, bias, *, channels_last=False):
    if channels_last:
        B, H, W, C = feat.shape
        xf = feat.astype(jnp.float32).reshape(B, H * W, C)
        mx = jnp.max(xf, axis=1)
        av = jnp.mean(xf, axis=1)
    else:
        B, C, H, W = feat.shape
        xf = feat.astype(jnp.float32).reshape(B, C, H * W)
        mx = jnp.max(xf, axis=-1)
        av = jnp.mean(xf, axis=-1)
    feats = jnp.concatenate([mx, av], axis=1)   # [max | avg], like PyTorch
    return feats @ weight.astype(jnp.float32).T + bias.astype(jnp.float32)


if __name__ == "__main__":
    # Small shapes consistent with the forward pass:
    #   backbone feature map: B=2, C(in_features)=32, spatial 8x8
    #   linear: in = 2*32 = 64, num_classes = 10
    B, C, H, W = 2, 32, 8, 8
    num_classes = 10

    key = jax.random.PRNGKey(0)
    k_feat, k_w, k_b = jax.random.split(key, 3)

    feat = jax.random.normal(k_feat, (B, C, H, W), dtype=jnp.float32)
    weight = 0.1 * jax.random.normal(k_w, (num_classes, 2 * C), dtype=jnp.float32)
    bias = 0.1 * jax.random.normal(k_b, (num_classes,), dtype=jnp.float32)

    ref = _reference(feat, weight, bias)

    # NCHW path (PyTorch layout, free reshape, in-kernel lane reduce).
    out = jax.block_until_ready(se_res_dp_head(feat, weight, bias))
    assert out.shape == (B, num_classes)
    assert jnp.allclose(out, ref, atol=1e-4, rtol=1e-4), "NCHW mismatch vs reference"

    # Channels-last path (preferred when the backbone emits NHWC).
    feat_nhwc = jnp.transpose(feat, (0, 2, 3, 1))
    out_nhwc = jax.block_until_ready(
        se_res_dp_head(feat_nhwc, weight, bias, channels_last=True))
    assert jnp.allclose(out_nhwc, ref, atol=1e-4, rtol=1e-4), "NHWC mismatch vs reference"

    print("KERNEL_OK")
</pallas_src>

<mosaic_0001>
module attributes {stable_mosaic.version = 11 : i64} {
  func.func @_se_res_dp_head_kernel(%arg0: i32, %arg1: memref<2x32x64xf32, #tpu.memory_space<vmem>>, %arg2: memref<32x128xf32, #tpu.memory_space<vmem>>, %arg3: memref<32x128xf32, #tpu.memory_space<vmem>>, %arg4: memref<1x128xf32, #tpu.memory_space<vmem>>, %arg5: memref<2x128xf32, #tpu.memory_space<vmem>>) attributes {dimension_semantics = [#tpu.dimension_semantics<parallel>], iteration_bounds = array<i64: 1>, scalar_prefetch = 0 : i64, scratch_operands = 0 : i64, tpu.core_type = #tpu.core_type<tc>, window_params = [{transform_indices = @transform_0, window_bounds = array<i64: 2, 32, 64>}, {pipeline_mode = #tpu.pipeline_mode<synchronous>, transform_indices = @transform_1, window_bounds = array<i64: 32, 128>}, {pipeline_mode = #tpu.pipeline_mode<synchronous>, transform_indices = @transform_2, window_bounds = array<i64: 32, 128>}, {pipeline_mode = #tpu.pipeline_mode<synchronous>, transform_indices = @transform_3, window_bounds = array<i64: 1, 128>}, {transform_indices = @transform_4, window_bounds = array<i64: 2, 128>}]} {
    %c0 = arith.constant 0 : index
    %c0_0 = arith.constant 0 : index
    %c0_1 = arith.constant 0 : index
    %0 = vector.load %arg1[%c0, %c0_0, %c0_1] : memref<2x32x64xf32, #tpu.memory_space<vmem>>, vector<2x32x64xf32>
    %cst = arith.constant dense<0xFF800000> : vector<2x32xf32>
    %1 = vector.multi_reduction <maximumf>, %0, %cst [2] : vector<2x32x64xf32> to vector<2x32xf32>
    %cst_2 = arith.constant dense<0.000000e+00> : vector<2x32xf32>
    %2 = vector.multi_reduction <add>, %0, %cst_2 [2] : vector<2x32x64xf32> to vector<2x32xf32>
    %c0_3 = arith.constant 0 : index
    %c0_4 = arith.constant 0 : index
    %3 = vector.load %arg2[%c0_3, %c0_4] : memref<32x128xf32, #tpu.memory_space<vmem>>, vector<32x128xf32>
    %cst_5 = arith.constant dense<0.000000e+00> : vector<2x128xf32>
    %4 = tpu.matmul %1, %3, %cst_5 {dimension_numbers = #tpu.dot_dimension_numbers<[1], [0], [0], [1], [0, 0, 1, 1], [], []>} : vector<2x32xf32>, vector<32x128xf32>, vector<2x128xf32> -> vector<2x128xf32>
    %c0_6 = arith.constant 0 : index
    %c0_7 = arith.constant 0 : index
    %5 = vector.load %arg3[%c0_6, %c0_7] : memref<32x128xf32, #tpu.memory_space<vmem>>, vector<32x128xf32>
    %cst_8 = arith.constant dense<0.000000e+00> : vector<2x128xf32>
    %6 = tpu.matmul %2, %5, %cst_8 {dimension_numbers = #tpu.dot_dimension_numbers<[1], [0], [0], [1], [0, 0, 1, 1], [], []>} : vector<2x32xf32>, vector<32x128xf32>, vector<2x128xf32> -> vector<2x128xf32>
    %7 = arith.addf %4, %6 : vector<2x128xf32>
    %c0_9 = arith.constant 0 : index
    %c0_10 = arith.constant 0 : index
    %8 = vector.load %arg4[%c0_9, %c0_10] : memref<1x128xf32, #tpu.memory_space<vmem>>, vector<1x128xf32>
    %9 = vector.broadcast %8 : vector<1x128xf32> to vector<2x128xf32>
    %10 = arith.addf %7, %9 : vector<2x128xf32>
    %c0_11 = arith.constant 0 : index
    %c0_12 = arith.constant 0 : index
    %11 = vector.load %arg5[%c0_11, %c0_12] : memref<2x128xf32, #tpu.memory_space<vmem>>, vector<2x128xf32>
    tpu.vector_store %arg5[%c0_11, %c0_12], %10 {strides = array<i32>} : memref<2x128xf32, #tpu.memory_space<vmem>>, vector<2x128xf32>,
    return
  }
  func.func @transform_0(%arg0: i32) -> (i32, i32, i32) {
    %c0_i32 = arith.constant 0 : i32
    %c0_i32_0 = arith.constant 0 : i32
    %c0_i32_1 = arith.constant 0 : i32
    return %arg0, %c0_i32, %c0_i32_0 : i32, i32, i32
  }
  func.func @transform_1(%arg0: i32) -> (i32, i32) {
    %c0_i32 = arith.constant 0 : i32
    %c0_i32_0 = arith.constant 0 : i32
    %c0_i32_1 = arith.constant 0 : i32
    return %c0_i32, %c0_i32_0 : i32, i32
  }
  func.func @transform_2(%arg0: i32) -> (i32, i32) {
    %c0_i32 = arith.constant 0 : i32
    %c0_i32_0 = arith.constant 0 : i32
    %c0_i32_1 = arith.constant 0 : i32
    return %c0_i32, %c0_i32_0 : i32, i32
  }
  func.func @transform_3(%arg0: i32) -> (i32, i32) {
    %c0_i32 = arith.constant 0 : i32
    %c0_i32_0 = arith.constant 0 : i32
    %c0_i32_1 = arith.constant 0 : i32
    return %c0_i32, %c0_i32_0 : i32, i32
  }
  func.func @transform_4(%arg0: i32) -> (i32, i32) {
    %c0_i32 = arith.constant 0 : i32
    %c0_i32_0 = arith.constant 0 : i32
    return %arg0, %c0_i32 : i32, i32
  }
}

</mosaic_0001>

<llo_original>
// kernel: tpu_custom_call.1
$region0: #{tpu_custom_call.1}
  #allocation0 [shape = 'u32[]', space=smem, size = 0x4, offset = 0x4, fixed_abs, tag = 'smem constant byte address 0x4 - core index']
  #allocation1 [shape = 'u32[144,128]{1,0:T(1,128)}', space=vmem, size = 0x12000, scoped, tag = 'internal scratch']
  %s0 = inlined_call_operand.hbm [shape: f32[2,32,64], index: 0, kind: input, shape index: {}]
  %s1 = inlined_call_operand.hbm [shape: f32[32,128], index: 1, kind: input, shape index: {}]
  %s2 = inlined_call_operand.hbm [shape: f32[32,128], index: 2, kind: input, shape index: {}]
  %s3 = inlined_call_operand.vmem [shape: f32[1,128], index: 3, kind: input, shape index: {}]
  %s4 = inlined_call_operand.hbm [shape: f32[2,128], index: 4, kind: output, shape index: {}]
  %s5 = sld [smem:[#allocation0]]
  $region38: #{tpu_custom_call.1} parent=0
    _
  %s7 = ssub.s32 1, %s5
  %s8 = scalar_select 0, %s7, %s5
  $region1: #{tpu_custom_call.1} parent=0
    #allocation2 [shape = 'u8[32768]{0}', space=vmem, size = 0x8000, scoped, tag = 'input window, operand 0, single buffered']
    #allocation3 [shape = 's32[1]{0}', space=sflag, size = 0x4, scoped, tag = 'scoped memory for tpu_custom_call.1']
    #allocation4 [shape = 's32[1]{0}', space=sflag, size = 0x4, scoped, tag = 'scoped memory for tpu_custom_call.1']
    #allocation5 [shape = 'u8[16384]{0}', space=vmem, size = 0x4000, scoped, tag = 'input window, operand 1, single buffered']
    #allocation6 [shape = 's32[1]{0}', space=sflag, size = 0x4, scoped, tag = 'scoped memory for tpu_custom_call.1']
    #allocation7 [shape = 'u8[16384]{0}', space=vmem, size = 0x4000, scoped, tag = 'input window, operand 2, single buffered']
    #allocation8 [shape = 'u8[1024]{0}', space=vmem, size = 0x400, scoped, tag = 'output window, operand 0, single buffered']
    %9 = vsyncpa [#allocation3], 0
    %10 = vsyncpa [#allocation6], 0
    %11 = vsyncpa [#allocation4], 0
    // Predicated region
    $region2: #{tpu_custom_call.1} parent=1 // pred_check
      _
    $region3: #{tpu_custom_call.1} parent=1 // pred_check_branch
      %13 = sbr.rel (0) target = $region5
    $region4: #{tpu_custom_call.1} parent=1 // pred_region
      %s15 = ssub.s32 1024, 1024
      %16 = vsyncadd [#allocation3], %s15
      %s17 = sshll.u32 [#allocation2], 4
      %s18 = int_to_ptr.vmem [resolvable:$true] %s17
      %23 = dma.hbm_to_vmem [thread:$0]  %s0, 1024, %s18, [#allocation3], 128, 128, 8
    $region5: #{tpu_custom_call.1} parent=1 // pred_fallthru
      _
    // Predicated region
    $region6: #{tpu_custom_call.1} parent=1 // pred_check
      _
    $region7: #{tpu_custom_call.1} parent=1 // pred_check_branch
      %25 = sbr.rel (0) target = $region9
    $region8: #{tpu_custom_call.1} parent=1 // pred_region
      %s27 = ssub.s32 512, 512
      %28 = vsyncadd [#allocation6], %s27
      %s29 = sshll.u32 [#allocation5], 4
      %s30 = int_to_ptr.vmem [resolvable:$true] %s29
      %35 = dma.hbm_to_vmem [thread:$0]  %s1, 512, %s30, [#allocation6], 128, 128, 8
    $region9: #{tpu_custom_call.1} parent=1 // pred_fallthru
      _
    // Predicated region
    $region10: #{tpu_custom_call.1} parent=1 // pred_check
      _
    $region11: #{tpu_custom_call.1} parent=1 // pred_check_branch
      %37 = sbr.rel (0) target = $region13
    $region12: #{tpu_custom_call.1} parent=1 // pred_region
      %s39 = ssub.s32 512, 512
      %40 = vsyncadd [#allocation6], %s39
      %s41 = sshll.u32 [#allocation7], 4
      %s42 = int_to_ptr.vmem [resolvable:$true] %s41
      %47 = dma.hbm_to_vmem [thread:$0]  %s2, 512, %s42, [#allocation6], 128, 128, 8
    $region13: #{tpu_custom_call.1} parent=1 // pred_fallthru
      _
    // Predicated region
    $region14: #{tpu_custom_call.1} parent=1 // pred_check
      _
    $region15: #{tpu_custom_call.1} parent=1 // pred_check_branch
      %49 = sbr.rel (0) target = $region17
    $region16: #{tpu_custom_call.1} parent=1 // pred_region
      _
    $region17: #{tpu_custom_call.1} parent=1 // pred_fallthru
      _
    // Predicated region
    $region18: #{tpu_custom_call.1} parent=1 // pred_check
      _
    $region19: #{tpu_custom_call.1} parent=1 // pred_check_branch
      %51 = sbr.rel (0) target = $region21
    $region20: #{tpu_custom_call.1} parent=1 // pred_region
      %52 = dma.done [#allocation3], 1024
    $region21: #{tpu_custom_call.1} parent=1 // pred_fallthru
      _
    // Predicated region
    $region22: #{tpu_custom_call.1} parent=1 // pred_check
      _
    $region23: #{tpu_custom_call.1} parent=1 // pred_check_branch
      %54 = sbr.rel (0) target = $region25
    $region24: #{tpu_custom_call.1} parent=1 // pred_region
      %55 = dma.done [#allocation6], 512
    $region25: #{tpu_custom_call.1} parent=1 // pred_fallthru
      _
    // Predicated region
    $region26: #{tpu_custom_call.1} parent=1 // pred_check
      _
    $region27: #{tpu_custom_call.1} parent=1 // pred_check_branch
      %57 = sbr.rel (0) target = $region29
    $region28: #{tpu_custom_call.1} parent=1 // pred_region
      %58 = dma.done [#allocation6], 512
    $region29: #{tpu_custom_call.1} parent=1 // pred_fallthru
      _
    %v59 = vld [vmem:[#allocation2] sm:$0xff]
    %v60 = vld [vmem:[#allocation2 + $0x8] sm:$0xff]
    %v61 = vld [vmem:[#allocation2 + $0x10] sm:$0xff]
    %v62 = vld [vmem:[#allocation2 + $0x18] sm:$0xff]
    %v63 = vld [vmem:[#allocation2 + $0x20] sm:$0xff]
    %v64 = vld [vmem:[#allocation2 + $0x28] sm:$0xff]
    %v65 = vld [vmem:[#allocation2 + $0x30] sm:$0xff]
    %v66 = vld [vmem:[#allocation2 + $0x38] sm:$0xff]
    %vm67 = vcmask 523264
    %v68 = vsel %vm67, %v59, -inf
    %69 = vmax.xlane.f32.xlu0 %v68
    %v70 = vpop.xlane.xlu0 %69
    %v71 = vsel %vm67, %v60, -inf
    %72 = vmax.xlane.f32.xlu0 %v71
    %v73 = vpop.xlane.xlu0 %72
    %v74 = vsel %vm67, %v61, -inf
    %75 = vmax.xlane.f32.xlu0 %v74
    %v76 = vpop.xlane.xlu0 %75
    %v77 = vsel %vm67, %v62, -inf
    %78 = vmax.xlane.f32.xlu0 %v77
    %v79 = vpop.xlane.xlu0 %78
    %v80 = vsel %vm67, %v63, -inf
    %81 = vmax.xlane.f32.xlu0 %v80
    %v82 = vpop.xlane.xlu0 %81
    %v83 = vsel %vm67, %v64, -inf
    %84 = vmax.xlane.f32.xlu0 %v83
    %v85 = vpop.xlane.xlu0 %84
    %v86 = vsel %vm67, %v65, -inf
    %87 = vmax.xlane.f32.xlu0 %v86
    %v88 = vpop.xlane.xlu0 %87
    %v89 = vsel %vm67, %v66, -inf
    %90 = vmax.xlane.f32.xlu0 %v89
    %v91 = vpop.xlane.xlu0 %90
    %v92 = vsel %vm67, %v59, 0.0
    %93 = vadd.xlane.f32.xlu0 %v92
    %v94 = vpop.xlane.xlu0 %93
    %v95 = vsel %vm67, %v60, 0.0
    %96 = vadd.xlane.f32.xlu0 %v95
    %v97 = vpop.xlane.xlu0 %96
    %v98 = vsel %vm67, %v61, 0.0
    %99 = vadd.xlane.f32.xlu0 %v98
    %v100 = vpop.xlane.xlu0 %99
    %v101 = vsel %vm67, %v62, 0.0
    %102 = vadd.xlane.f32.xlu0 %v101
    %v103 = vpop.xlane.xlu0 %102
    %v104 = vsel %vm67, %v63, 0.0
    %105 = vadd.xlane.f32.xlu0 %v104
    %v106 = vpop.xlane.xlu0 %105
    %v107 = vsel %vm67, %v64, 0.0
    %108 = vadd.xlane.f32.xlu0 %v107
    %v109 = vpop.xlane.xlu0 %108
    %v110 = vsel %vm67, %v65, 0.0
    %111 = vadd.xlane.f32.xlu0 %v110
    %v112 = vpop.xlane.xlu0 %111
    %v113 = vsel %vm67, %v66, 0.0
    %114 = vadd.xlane.f32.xlu0 %v113
    %v115 = vpop.xlane.xlu0 %114
    %v116 = vld [vmem:[#allocation5] sm:$0xff]
    %v117 = vld [vmem:[#allocation5 + $0x8] sm:$0xff]
    %v118 = vld [vmem:[#allocation5 + $0x10] sm:$0xff]
    %v119 = vld [vmem:[#allocation5 + $0x18] sm:$0xff]
    %v120 = vld [vmem:[#allocation7] sm:$0xff]
    %v121 = vld [vmem:[#allocation7 + $0x8] sm:$0xff]
    %v122 = vld [vmem:[#allocation7 + $0x10] sm:$0xff]
    %v123 = vld [vmem:[#allocation7 + $0x18] sm:$0xff]
    %v132 = vlaneseq
    %v133 = vand.u32 %v132, 127
    %v134 = vlaneseq
    %v135 = vshrl.u32 %v134, 7
    %v136 = vsub.s32 %v133, %v135
    %v137 = vrot.slane %v94, %v136
    %v138 = vadd.s32 %v133, 4294967288
    %v139 = vlaneseq
    %v140 = vshrl.u32 %v139, 7
    %v141 = vsub.s32 %v138, %v140
    %v142 = vrot.slane %v97, %v141
    %vm143 = vcmask 130112
    %v144 = vsel %vm143, %v142, %v137
    %v145 = vadd.s32 %v133, 4294967280
    %v146 = vlaneseq
    %v147 = vshrl.u32 %v146, 7
    %v148 = vsub.s32 %v145, %v147
    %v149 = vrot.slane %v100, %v148
    %vm150 = vcmask 195712
    %v151 = vsel %vm150, %v149, %v144
    %v152 = vadd.s32 %v133, 4294967272
    %v153 = vlaneseq
    %v154 = vshrl.u32 %v153, 7
    %v155 = vsub.s32 %v152, %v154
    %v156 = vrot.slane %v103, %v155
    %vm157 = vcmask 261312
    %v158 = vsel %vm157, %v156, %v151
    %v159 = vlaneseq
    %v160 = vshrl.u32 %v159, 7
    %v161 = vsub.s32 %v133, %v160
    %v162 = vrot.slane %v106, %v161
    %v163 = vlaneseq
    %v164 = vshrl.u32 %v163, 7
    %v165 = vsub.s32 %v138, %v164
    %v166 = vrot.slane %v109, %v165
    %v167 = vsel %vm143, %v166, %v162
    %v168 = vlaneseq
    %v169 = vshrl.u32 %v168, 7
    %v170 = vsub.s32 %v145, %v169
    %v171 = vrot.slane %v112, %v170
    %v172 = vsel %vm150, %v171, %v167
    %v173 = vlaneseq
    %v174 = vshrl.u32 %v173, 7
    %v175 = vsub.s32 %v152, %v174
    %v176 = vrot.slane %v115, %v175
    %v177 = vsel %vm157, %v176, %v172
    %vm178 = vcmask 1041409
    %v179 = vsel %vm178, %v177, %v158
    %vm180 = vcmask 261120
    %v181 = vsel %vm180, %v179, 0
    %183 = vmatprep.subr.mxu0 0.0
    %184 = vmatpush1.msra.mxu0 %v120
    %185 = vmatprep.subr.mxu0 0.0
    %186 = vmatpush1.msra.mxu0 %v121
    %187 = vmatprep.subr.mxu0 0.0
    %188 = vmatpush1.msra.mxu0 %v122
    %189 = vmatprep.subr.mxu0 0.0
    %190 = vmatpush1.msra.mxu0 %v123
    %191 = vmatprep.subr.mxu0 0.0
    %192 = vmatpush1.msra.mxu0 0.0
    %193 = vmatprep.subr.mxu0 0.0
    %194 = vmatpush1.msra.mxu0 0.0
    %195 = vmatprep.subr.mxu0 0.0
    %196 = vmatpush1.msra.mxu0 0.0
    %197 = vmatprep.subr.mxu0 0.0
    %198 = vmatpush1.msra.mxu0 0.0
    %199 = vmatprep.subr.mxu0 0.0
    %200 = vmatpush1.msra.mxu0 0.0
    %201 = vmatprep.subr.mxu0 0.0
    %202 = vmatpush1.msra.mxu0 0.0
    %203 = vmatprep.subr.mxu0 0.0
    %204 = vmatpush1.msra.mxu0 0.0
    %205 = vmatprep.subr.mxu0 0.0
    %206 = vmatpush1.msra.mxu0 0.0
    %207 = vmatprep.subr.mxu0 0.0
    %208 = vmatpush1.msra.mxu0 0.0
    %209 = vmatprep.subr.mxu0 0.0
    %210 = vmatpush1.msra.mxu0 0.0
    %211 = vmatprep.subr.mxu0 0.0
    %212 = vmatpush1.msra.mxu0 0.0
    %213 = vmatprep.subr.mxu0 0.0
    %214 = vmatpush1.msra.mxu0 0.0
    %215 = vmatprep.subr.mxu0 0.0
    %216 = vmatpush1.msra.mxu0 0.0
    %217 = vmatprep.subr.mxu0 0.0
    %218 = vmatpush1.msra.mxu0 0.0
    %219 = vmatprep.subr.mxu0 0.0
    %220 = vmatpush1.msra.mxu0 0.0
    %221 = vmatprep.subr.mxu0 0.0
    %222 = vmatpush1.msra.mxu0 0.0
    %223 = vmatprep.subr.mxu0 0.0
    %224 = vmatpush1.msra.mxu0 0.0
    %225 = vmatprep.subr.mxu0 0.0
    %226 = vmatpush1.msra.mxu0 0.0
    %227 = vmatprep.subr.mxu0 0.0
    %228 = vmatpush1.msra.mxu0 0.0
    %229 = vmatprep.subr.mxu0 0.0
    %230 = vmatpush1.msra.mxu0 0.0
    %231 = vmatprep.subr.mxu0 0.0
    %232 = vmatpush1.msra.mxu0 0.0
    %233 = vmatprep.subr.mxu0 0.0
    %234 = vmatpush1.msra.mxu0 0.0
    %235 = vmatprep.subr.mxu0 0.0
    %236 = vmatpush1.msra.mxu0 0.0
    %237 = vmatprep.subr.mxu0 0.0
    %238 = vmatpush1.msra.mxu0 0.0
    %239 = vmatprep.subr.mxu0 0.0
    %240 = vmatpush1.msra.mxu0 0.0
    %241 = vmatprep.subr.mxu0 0.0
    %242 = vmatpush1.msra.mxu0 0.0
    %243 = vmatprep.subr.mxu0 0.0
    %244 = vmatpush1.msra.mxu0 0.0
    %245 = vmatprep.subr.mxu0 0.0
    %246 = vmatpush1.msra.mxu0 0.0
    %247 = vmatprep.mubr.f32.mxu0 0.0
    %248 = vmatmul.mubr.f32.gmra.mrb[0].mxu0 %v181
    %v249 = vpop.f32.mrb[0].mxu0
    %v250 = vadd.f32 0.0, %v249
    %v251 = vpop.f32.mrb[0].mxu0
    %252 = vdwg.mxu0
    %v261 = vlaneseq
    %v262 = vshrl.u32 %v261, 7
    %v263 = vsub.s32 %v133, %v262
    %v264 = vrot.slane %v70, %v263
    %v265 = vlaneseq
    %v266 = vshrl.u32 %v265, 7
    %v267 = vsub.s32 %v138, %v266
    %v268 = vrot.slane %v73, %v267
    %v269 = vsel %vm143, %v268, %v264
    %v270 = vlaneseq
    %v271 = vshrl.u32 %v270, 7
    %v272 = vsub.s32 %v145, %v271
    %v273 = vrot.slane %v76, %v272
    %v274 = vsel %vm150, %v273, %v269
    %v275 = vlaneseq
    %v276 = vshrl.u32 %v275, 7
    %v277 = vsub.s32 %v152, %v276
    %v278 = vrot.slane %v79, %v277
    %v279 = vsel %vm157, %v278, %v274
    %v280 = vlaneseq
    %v281 = vshrl.u32 %v280, 7
    %v282 = vsub.s32 %v133, %v281
    %v283 = vrot.slane %v82, %v282
    %v284 = vlaneseq
    %v285 = vshrl.u32 %v284, 7
    %v286 = vsub.s32 %v138, %v285
    %v287 = vrot.slane %v85, %v286
    %v288 = vsel %vm143, %v287, %v283
    %v289 = vlaneseq
    %v290 = vshrl.u32 %v289, 7
    %v291 = vsub.s32 %v145, %v290
    %v292 = vrot.slane %v88, %v291
    %v293 = vsel %vm150, %v292, %v288
    %v294 = vlaneseq
    %v295 = vshrl.u32 %v294, 7
    %v296 = vsub.s32 %v152, %v295
    %v297 = vrot.slane %v91, %v296
    %v298 = vsel %vm157, %v297, %v293
    %v299 = vsel %vm178, %v298, %v279
    %v300 = vsel %vm180, %v299, 0
    %302 = vmatprep.subr.mxu0 0.0
    %303 = vmatpush1.msra.mxu0 %v116
    %304 = vmatprep.subr.mxu0 0.0
    %305 = vmatpush1.msra.mxu0 %v117
    %306 = vmatprep.subr.mxu0 0.0
    %307 = vmatpush1.msra.mxu0 %v118
    %308 = vmatprep.subr.mxu0 0.0
    %309 = vmatpush1.msra.mxu0 %v119
    %310 = vmatprep.subr.mxu0 0.0
    %311 = vmatpush1.msra.mxu0 0.0
    %312 = vmatprep.subr.mxu0 0.0
    %313 = vmatpush1.msra.mxu0 0.0
    %314 = vmatprep.subr.mxu0 0.0
    %315 = vmatpush1.msra.mxu0 0.0
    %316 = vmatprep.subr.mxu0 0.0
    %317 = vmatpush1.msra.mxu0 0.0
    %318 = vmatprep.subr.mxu0 0.0
    %319 = vmatpush1.msra.mxu0 0.0
    %320 = vmatprep.subr.mxu0 0.0
    %321 = vmatpush1.msra.mxu0 0.0
    %322 = vmatprep.subr.mxu0 0.0
    %323 = vmatpush1.msra.mxu0 0.0
    %324 = vmatprep.subr.mxu0 0.0
    %325 = vmatpush1.msra.mxu0 0.0
    %326 = vmatprep.subr.mxu0 0.0
    %327 = vmatpush1.msra.mxu0 0.0
    %328 = vmatprep.subr.mxu0 0.0
    %329 = vmatpush1.msra.mxu0 0.0
    %330 = vmatprep.subr.mxu0 0.0
    %331 = vmatpush1.msra.mxu0 0.0
    %332 = vmatprep.subr.mxu0 0.0
    %333 = vmatpush1.msra.mxu0 0.0
    %334 = vmatprep.subr.mxu0 0.0
    %335 = vmatpush1.msra.mxu0 0.0
    %336 = vmatprep.subr.mxu0 0.0
    %337 = vmatpush1.msra.mxu0 0.0
    %338 = vmatprep.subr.mxu0 0.0
    %339 = vmatpush1.msra.mxu0 0.0
    %340 = vmatprep.subr.mxu0 0.0
    %341 = vmatpush1.msra.mxu0 0.0
    %342 = vmatprep.subr.mxu0 0.0
    %343 = vmatpush1.msra.mxu0 0.0
    %344 = vmatprep.subr.mxu0 0.0
    %345 = vmatpush1.msra.mxu0 0.0
    %346 = vmatprep.subr.mxu0 0.0
    %347 = vmatpush1.msra.mxu0 0.0
    %348 = vmatprep.subr.mxu0 0.0
    %349 = vmatpush1.msra.mxu0 0.0
    %350 = vmatprep.subr.mxu0 0.0
    %351 = vmatpush1.msra.mxu0 0.0
    %352 = vmatprep.subr.mxu0 0.0
    %353 = vmatpush1.msra.mxu0 0.0
    %354 = vmatprep.subr.mxu0 0.0
    %355 = vmatpush1.msra.mxu0 0.0
    %356 = vmatprep.subr.mxu0 0.0
    %357 = vmatpush1.msra.mxu0 0.0
    %358 = vmatprep.subr.mxu0 0.0
    %359 = vmatpush1.msra.mxu0 0.0
    %360 = vmatprep.subr.mxu0 0.0
    %361 = vmatpush1.msra.mxu0 0.0
    %362 = vmatprep.subr.mxu0 0.0
    %363 = vmatpush1.msra.mxu0 0.0
    %364 = vmatprep.subr.mxu0 0.0
    %365 = vmatpush1.msra.mxu0 0.0
    %366 = vmatprep.mubr.f32.mxu0 0.0
    %367 = vmatmul.mubr.f32.gmra.mrb[0].mxu0 %v300
    %v368 = vpop.f32.mrb[0].mxu0
    %v369 = vadd.f32 %v250, %v368
    %v370 = vpop.f32.mrb[0].mxu0
    %371 = vdwg.mxu0
    %v372 = vld [vmem:[%s3] sm:$0x1]
    %v374 = vlaneseq
    %v375 = vshrl.u32 %v374, 7
    %v376 = vsub.s32 0, %v375
    %v377 = vrot.slane %v372, %v376
    %v379 = vadd.f32 %v369, %v377
    %380 = vst [vmem:[#allocation8] sm:$0x3] %v379
    // Predicated region
    $region30: #{tpu_custom_call.1} parent=1 // pred_check
      _
    $region31: #{tpu_custom_call.1} parent=1 // pred_check_branch
      %382 = sbr.rel (0) target = $region33
    $region32: #{tpu_custom_call.1} parent=1 // pred_region
      %s384 = ssub.s32 32, 32
      %385 = vsyncadd [#allocation4], %s384
      %s387 = sshll.u32 [#allocation8], 4
      %s388 = int_to_ptr.vmem [resolvable:$true] %s387
      %390 = dma.vmem_to_hbm [thread:$0]  %s388, 32, %s4, [#allocation4]
    $region33: #{tpu_custom_call.1} parent=1 // pred_fallthru
      _
    // Predicated region
    $region34: #{tpu_custom_call.1} parent=1 // pred_check
      _
    $region35: #{tpu_custom_call.1} parent=1 // pred_check_branch
      %392 = sbr.rel (0) target = $region37
    $region36: #{tpu_custom_call.1} parent=1 // pred_region
      %393 = dma.done [#allocation4], 32
    $region37: #{tpu_custom_call.1} parent=1 // pred_fallthru
      _
    %394 = vsyncpa [#allocation3], 1
    %395 = vsyncpa [#allocation6], 1
    %396 = vsyncpa [#allocation4], 1

</llo_original>
